<compile_context>
chip_gen: v6e
topology: v6e:2x2x1
jax: 0.10.0
libtpu: 0.0.40
codegen_flags: <defaults>
</compile_context>

<pallas_src>
import functools

import jax
import jax.numpy as jnp
import numpy as np
from jax.experimental import pallas as pl
from jax.experimental.pallas import tpu as pltpu


# ---------------------------------------------------------------------------
# Kernel bodies
# ---------------------------------------------------------------------------
def _modulating_factor(one_minus_pt, gamma):
    """ (1 - pt) ** gamma, with EUP-free fast paths for small integer gamma."""
    g = float(gamma)
    if g == 0.0:
        return jnp.ones_like(one_minus_pt)
    if g == 1.0:
        return one_minus_pt
    if g == int(g) and 2 <= int(g) <= 4:
        out = one_minus_pt
        for _ in range(int(g) - 1):
            out = out * one_minus_pt          # VPU multiplies, no exp/log
        return out
    return jnp.power(one_minus_pt, g)          # general case -> EUP


def _per_pixel_loss(alpha_ref, logits_ref, labels_ref, *, gamma, ignore_index):
    """Shared per-tile focal-loss math.

    alpha_ref : (C, 1) f32, logits_ref: (1, C, T), labels_ref: (1, 1, T) int32.
    Returns (loss, ignore) with shapes (1, 1, T) f32 / bool.
    """
    logits = logits_ref[...].astype(jnp.float32)              # (1, C, T)
    labels = labels_ref[...]                                   # (1, 1, T)
    alpha = alpha_ref[...].astype(jnp.float32)[None]           # (1, C, 1)

    # one-hot of (clamped) labels via broadcasted iota along the class axis
    class_ids = jax.lax.broadcasted_iota(jnp.int32, logits.shape, 1)  # (1, C, T)
    ignore = labels == ignore_index                            # (1, 1, T) bool
    y_index = jnp.where(ignore, 0, labels)                     # (1, 1, T)
    one_hot = (class_ids == y_index).astype(jnp.float32)       # (1, C, T)

    # numerically stable log-softmax over the class (sublane) axis
    m = jnp.max(logits, axis=1, keepdims=True)                 # (1, 1, T)
    shifted = logits - m
    logsumexp = jnp.log(jnp.sum(jnp.exp(shifted), axis=1, keepdims=True))

    logit_at_label = jnp.sum(shifted * one_hot, axis=1, keepdims=True)
    log_pt = logit_at_label - logsumexp                        # log p(label)
    pt = jnp.exp(log_pt)                                       # p(label)
    ce = -log_pt                                               # unweighted CE

    cls_balance = jnp.sum(alpha * one_hot, axis=1, keepdims=True)   # alpha[label]

    modular = _modulating_factor(1.0 - pt, gamma)

    loss = ce * modular * cls_balance
    # F.cross_entropy(..., ignore_index, reduction='none') is 0 at ignored
    # positions, so the final per-pixel loss is 0 there.
    loss = jnp.where(ignore, 0.0, loss)
    return loss, ignore


def _focal_loss_kernel(alpha_ref, logits_ref, labels_ref, loss_ref, *,
                       gamma, ignore_index):
    loss, _ = _per_pixel_loss(alpha_ref, logits_ref, labels_ref,
                              gamma=gamma, ignore_index=ignore_index)
    loss_ref[...] = loss.astype(loss_ref.dtype)


def _focal_loss_mean_kernel(alpha_ref, logits_ref, labels_ref,
                            sum_ref, cnt_ref, *, gamma, ignore_index):
    # Per-batch accumulators (1,1,1); same block across the pixel-tile axis.
    @pl.when(pl.program_id(1) == 0)
    def _():
        sum_ref[...] = jnp.zeros_like(sum_ref)
        cnt_ref[...] = jnp.zeros_like(cnt_ref)

    loss, ignore = _per_pixel_loss(alpha_ref, logits_ref, labels_ref,
                                   gamma=gamma, ignore_index=ignore_index)
    valid = jnp.logical_not(ignore).astype(jnp.float32)
    sum_ref[...] = sum_ref[...] + jnp.sum(loss)
    cnt_ref[...] = cnt_ref[...] + jnp.sum(valid)


# ---------------------------------------------------------------------------
# Wrapper
# ---------------------------------------------------------------------------
def _pick_tile_px(hw, c, target_bytes):
    """Largest pixel tile that divides hw, is a multiple of 128 (or == hw),
    with the f32 logits block (C * tile * 4B) near `target_bytes`."""
    cap = max(128, target_bytes // (4 * c))
    if hw <= cap:
        return hw
    best = 0
    d = 1
    while d * d <= hw:
        if hw % d == 0:
            for t in (d, hw // d):
                if t <= cap and t % 128 == 0 and t > best:
                    best = t
        d += 1
    # No 128-aligned divisor under the cap: fall back to full rows (== hw),
    # which always satisfies the TPU layout constraint (no padding needed).
    return best if best else hw


def focal_loss(y_pred, y_true, alpha, *, gamma=1.0, ignore_index=255,
               reduction=False, target_block_bytes=2 << 20):
    """y_pred: (N, C, H, W) float logits; y_true: (N, H, W) int labels."""
    N, C, H, W = y_pred.shape
    HW = H * W

    # Pixels-on-lanes layout. Reshapes merge/split trailing axes only — no
    # transpose pass, no jnp.pad (tile_px is chosen to divide HW exactly).
    logits = y_pred.reshape(N, C, HW)
    labels = y_true.reshape(N, 1, HW).astype(jnp.int32)
    alpha2d = jnp.asarray(alpha, dtype=jnp.float32).reshape(C, 1)

    tile_px = _pick_tile_px(HW, C, target_block_bytes)
    grid = (N, HW // tile_px)

    alpha_spec = pl.BlockSpec((C, 1), lambda b, j: (0, 0))
    logits_spec = pl.BlockSpec((1, C, tile_px), lambda b, j: (b, 0, j))
    labels_spec = pl.BlockSpec((1, 1, tile_px), lambda b, j: (b, 0, j))

    if reduction:
        # Fused mean: accumulate sum(loss) / sum(valid) per batch, no per-pixel
        # loss writeback to HBM and no second pass.
        kernel = functools.partial(_focal_loss_mean_kernel, gamma=float(gamma),
                                   ignore_index=int(ignore_index))
        loss_sum, valid_cnt = pl.pallas_call(
            kernel,
            out_shape=(jax.ShapeDtypeStruct((N, 1, 1), jnp.float32),
                       jax.ShapeDtypeStruct((N, 1, 1), jnp.float32)),
            grid_spec=pltpu.PrefetchScalarGridSpec(
                num_scalar_prefetch=0,
                grid=grid,
                in_specs=[alpha_spec, logits_spec, labels_spec],
                out_specs=(pl.BlockSpec((1, 1, 1), lambda b, j: (b, 0, 0)),
                           pl.BlockSpec((1, 1, 1), lambda b, j: (b, 0, 0))),
            ),
            compiler_params=pltpu.CompilerParams(
                dimension_semantics=("parallel", "arbitrary")),
        )(alpha2d, logits, labels)
        # Matches PyTorch: sum(loss) / sum(valid)  (NaN if every pixel ignored).
        return jnp.sum(loss_sum) / jnp.sum(valid_cnt)

    kernel = functools.partial(_focal_loss_kernel, gamma=float(gamma),
                               ignore_index=int(ignore_index))
    losses = pl.pallas_call(
        kernel,
        out_shape=jax.ShapeDtypeStruct((N, 1, HW), jnp.float32),
        grid_spec=pltpu.PrefetchScalarGridSpec(
            num_scalar_prefetch=0,
            grid=grid,
            in_specs=[alpha_spec, logits_spec, labels_spec],
            out_specs=pl.BlockSpec((1, 1, tile_px), lambda b, j: (b, 0, j)),
        ),
        compiler_params=pltpu.CompilerParams(
            dimension_semantics=("parallel", "parallel")),
    )(alpha2d, logits, labels)

    return losses.reshape(N, H, W)


# ---------------------------------------------------------------------------
# Pure-JAX reference (mirrors the PyTorch forward, reduction=False)
# ---------------------------------------------------------------------------
def _focal_loss_ref(y_pred, y_true, alpha, gamma=1.0, ignore_index=255):
    alpha = jnp.asarray(alpha, jnp.float32)
    p = jax.nn.softmax(y_pred.astype(jnp.float32), axis=1)
    ignore = y_true == ignore_index
    y_index = jnp.where(ignore, 0, y_true)
    one_hot = jax.nn.one_hot(y_index, y_pred.shape[1], axis=1, dtype=jnp.float32)
    pt = jnp.sum(p * one_hot, axis=1)
    modular = jnp.power(1.0 - pt, gamma)
    cls_bal = jnp.sum(alpha.reshape(1, -1, 1, 1) * one_hot, axis=1)
    modular = modular * cls_bal
    logp = jax.nn.log_softmax(y_pred.astype(jnp.float32), axis=1)
    ce = -jnp.sum(logp * one_hot, axis=1)
    ce = jnp.where(ignore, 0.0, ce)
    return ce * modular


if __name__ == "__main__":
    # small synthetic shapes consistent with the module's NCHW conv-output input
    N, C, H, W = 2, 4, 16, 16
    ignore_index = 255

    key = jax.random.PRNGKey(0)
    k_logits, k_labels, k_mask = jax.random.split(key, 3)

    y_pred = jax.random.normal(k_logits, (N, C, H, W), dtype=jnp.float32)
    y_true = jax.random.randint(k_labels, (N, H, W), 0, C, dtype=jnp.int32)
    ignore_mask = jax.random.uniform(k_mask, (N, H, W)) < 0.1
    y_true = jnp.where(ignore_mask, ignore_index, y_true)

    # deterministic per-class alpha weights (module takes alpha as a numpy array)
    alpha = np.linspace(0.25, 1.0, C).astype(np.float32)

    for gamma in (1.0, 2.0, 2.5):
        # per-pixel losses (reduction=False)
        losses = jax.block_until_ready(
            focal_loss(y_pred, y_true, alpha, gamma=gamma,
                       ignore_index=ignore_index, reduction=False))
        ref = _focal_loss_ref(y_pred, y_true, alpha, gamma, ignore_index)
        np.testing.assert_allclose(np.asarray(losses), np.asarray(ref),
                                   rtol=1e-5, atol=1e-5)

        # fused mean (reduction=True)
        mean_loss = jax.block_until_ready(
            focal_loss(y_pred, y_true, alpha, gamma=gamma,
                       ignore_index=ignore_index, reduction=True))
        valid = (y_true != ignore_index).astype(jnp.float32)
        ref_mean = jnp.sum(ref) / jnp.sum(valid)
        np.testing.assert_allclose(np.asarray(mean_loss), np.asarray(ref_mean),
                                   rtol=1e-5, atol=1e-5)

    print("KERNEL_OK")
</pallas_src>

<mosaic_0001>
module attributes {stable_mosaic.version = 11 : i64} {
  func.func @_focal_loss_kernel(%arg0: i32, %arg1: i32, %arg2: memref<4x1xf32, #tpu.memory_space<vmem>>, %arg3: memref<1x4x256xf32, #tpu.memory_space<vmem>>, %arg4: memref<1x1x256xi32, #tpu.memory_space<vmem>>, %arg5: memref<1x1x256xf32, #tpu.memory_space<vmem>>) attributes {dimension_semantics = [#tpu.dimension_semantics<parallel>, #tpu.dimension_semantics<parallel>], iteration_bounds = array<i64: 2, 1>, scalar_prefetch = 0 : i64, scratch_operands = 0 : i64, tpu.core_type = #tpu.core_type<tc>, window_params = [{pipeline_mode = #tpu.pipeline_mode<synchronous>, transform_indices = @transform_0, window_bounds = array<i64: 4, 1>}, {transform_indices = @transform_1, window_bounds = array<i64: 1, 4, 256>}, {transform_indices = @transform_2, window_bounds = array<i64: 1, 1, 256>}, {transform_indices = @transform_3, window_bounds = array<i64: 1, 1, 256>}]} {
    %c0 = arith.constant 0 : index
    %c0_0 = arith.constant 0 : index
    %c0_1 = arith.constant 0 : index
    %0 = vector.load %arg3[%c0, %c0_0, %c0_1] : memref<1x4x256xf32, #tpu.memory_space<vmem>>, vector<1x4x256xf32>
    %c0_2 = arith.constant 0 : index
    %c0_3 = arith.constant 0 : index
    %c0_4 = arith.constant 0 : index
    %1 = vector.load %arg4[%c0_2, %c0_3, %c0_4] : memref<1x1x256xi32, #tpu.memory_space<vmem>>, vector<1x1x256xi32>
    %c0_5 = arith.constant 0 : index
    %c0_6 = arith.constant 0 : index
    %2 = vector.load %arg2[%c0_5, %c0_6] : memref<4x1xf32, #tpu.memory_space<vmem>>, vector<4x1xf32>
    %3 = vector.shape_cast %2 : vector<4x1xf32> to vector<1x4x1xf32>
    %4 = tpu.iota {dimensions = array<i32: 1>} : vector<1x4x256xi32>
    %c255_i32 = arith.constant 255 : i32
    %5 = vector.broadcast %c255_i32 : i32 to vector<1x1x256xi32>
    %6 = arith.cmpi eq, %1, %5 : vector<1x1x256xi32>
    %c0_i32 = arith.constant 0 : i32
    %7 = vector.broadcast %c0_i32 : i32 to vector<1x1x256xi32>
    %8 = arith.select %6, %7, %1 : vector<1x1x256xi1>, vector<1x1x256xi32>
    %9 = vector.broadcast %8 : vector<1x1x256xi32> to vector<1x4x256xi32>
    %10 = arith.cmpi eq, %4, %9 : vector<1x4x256xi32>
    %11 = arith.extui %10 : vector<1x4x256xi1> to vector<1x4x256xi32>
    %12 = arith.sitofp %11 : vector<1x4x256xi32> to vector<1x4x256xf32>
    %cst = arith.constant dense<0xFF800000> : vector<1x256xf32>
    %13 = vector.multi_reduction <maximumf>, %0, %cst [1] : vector<1x4x256xf32> to vector<1x256xf32>
    %14 = vector.shape_cast %13 : vector<1x256xf32> to vector<1x1x256xf32>
    %15 = vector.broadcast %14 : vector<1x1x256xf32> to vector<1x4x256xf32>
    %16 = arith.subf %0, %15 : vector<1x4x256xf32>
    %17 = math.exp %16 : vector<1x4x256xf32>
    %cst_7 = arith.constant dense<0.000000e+00> : vector<1x256xf32>
    %18 = vector.multi_reduction <add>, %17, %cst_7 [1] : vector<1x4x256xf32> to vector<1x256xf32>
    %19 = vector.shape_cast %18 : vector<1x256xf32> to vector<1x1x256xf32>
    %20 = math.log %19 : vector<1x1x256xf32>
    %21 = arith.mulf %16, %12 : vector<1x4x256xf32>
    %cst_8 = arith.constant dense<0.000000e+00> : vector<1x256xf32>
    %22 = vector.multi_reduction <add>, %21, %cst_8 [1] : vector<1x4x256xf32> to vector<1x256xf32>
    %23 = vector.shape_cast %22 : vector<1x256xf32> to vector<1x1x256xf32>
    %24 = arith.subf %23, %20 : vector<1x1x256xf32>
    %25 = math.exp %24 : vector<1x1x256xf32>
    %cst_9 = arith.constant 0.000000e+00 : f32
    %26 = vector.broadcast %cst_9 : f32 to vector<1x1x256xf32>
    %27 = arith.subf %26, %24 : vector<1x1x256xf32>
    %28 = vector.broadcast %3 : vector<1x4x1xf32> to vector<1x4x256xf32>
    %29 = arith.mulf %28, %12 : vector<1x4x256xf32>
    %cst_10 = arith.constant dense<0.000000e+00> : vector<1x256xf32>
    %30 = vector.multi_reduction <add>, %29, %cst_10 [1] : vector<1x4x256xf32> to vector<1x256xf32>
    %31 = vector.shape_cast %30 : vector<1x256xf32> to vector<1x1x256xf32>
    %cst_11 = arith.constant 1.000000e+00 : f32
    %32 = vector.broadcast %cst_11 : f32 to vector<1x1x256xf32>
    %33 = arith.subf %32, %25 : vector<1x1x256xf32>
    %34 = arith.mulf %27, %33 : vector<1x1x256xf32>
    %35 = arith.mulf %34, %31 : vector<1x1x256xf32>
    %cst_12 = arith.constant 0.000000e+00 : f32
    %36 = vector.broadcast %cst_12 : f32 to vector<1x1x256xf32>
    %37 = arith.select %6, %36, %35 : vector<1x1x256xi1>, vector<1x1x256xf32>
    %c0_13 = arith.constant 0 : index
    %c0_14 = arith.constant 0 : index
    %c0_15 = arith.constant 0 : index
    %38 = vector.load %arg5[%c0_13, %c0_14, %c0_15] : memref<1x1x256xf32, #tpu.memory_space<vmem>>, vector<1x1x256xf32>
    tpu.vector_store %arg5[%c0_13, %c0_14, %c0_15], %37 {strides = array<i32>} : memref<1x1x256xf32, #tpu.memory_space<vmem>>, vector<1x1x256xf32>,
    return
  }
  func.func @transform_0(%arg0: i32, %arg1: i32) -> (i32, i32) {
    %c0_i32 = arith.constant 0 : i32
    %c0_i32_0 = arith.constant 0 : i32
    %c0_i32_1 = arith.constant 0 : i32
    return %c0_i32, %c0_i32_0 : i32, i32
  }
  func.func @transform_1(%arg0: i32, %arg1: i32) -> (i32, i32, i32) {
    %c0_i32 = arith.constant 0 : i32
    %c0_i32_0 = arith.constant 0 : i32
    return %arg0, %c0_i32, %arg1 : i32, i32, i32
  }
  func.func @transform_2(%arg0: i32, %arg1: i32) -> (i32, i32, i32) {
    %c0_i32 = arith.constant 0 : i32
    %c0_i32_0 = arith.constant 0 : i32
    return %arg0, %c0_i32, %arg1 : i32, i32, i32
  }
  func.func @transform_3(%arg0: i32, %arg1: i32) -> (i32, i32, i32) {
    %c0_i32 = arith.constant 0 : i32
    %c0_i32_0 = arith.constant 0 : i32
    return %arg0, %c0_i32, %arg1 : i32, i32, i32
  }
}

</mosaic_0001>

<llo_original>
// kernel: tpu_custom_call.1
$region0: #{tpu_custom_call.1}
  #allocation0 [shape = 'u32[]', space=smem, size = 0x4, offset = 0x4, fixed_abs, tag = 'smem constant byte address 0x4 - core index']
  #allocation1 [shape = 'u32[144,128]{1,0:T(1,128)}', space=vmem, size = 0x12000, scoped, tag = 'internal scratch']
  %s0 = inlined_call_operand.vmem [shape: f32[4,1], index: 0, kind: input, shape index: {}]
  %s1 = inlined_call_operand.hbm [shape: f32[2,4,256], index: 1, kind: input, shape index: {}]
  %s2 = inlined_call_operand.vmem [shape: s32[2,1,256], index: 2, kind: input, shape index: {}]
  %s3 = inlined_call_operand.hbm [shape: f32[2,1,256], index: 3, kind: output, shape index: {}]
  %s4 = sld [smem:[#allocation0]]
  $region49: #{tpu_custom_call.1} parent=0
    _
  %s6 = ssub.s32 1, %s4
  %s7 = scalar_select 0, %s6, %s4
  $region1: #{tpu_custom_call.1} parent=0
    #allocation2 [shape = 'u8[8192]{0}', space=vmem, size = 0x2000, scoped, tag = 'input window, operand 1']
    #allocation3 [shape = 's32[2]{0}', space=sflag, size = 0x8, scoped, tag = 'scoped memory for tpu_custom_call.1']
    #allocation4 [shape = 's32[2]{0}', space=sflag, size = 0x8, scoped, tag = 'scoped memory for tpu_custom_call.1']
    #allocation5 [shape = 'u8[2048]{0}', space=vmem, size = 0x800, scoped, tag = 'output window, operand 0']
    %8 = vsyncpa [#allocation3], 0
    %s9 = scalar_lea.sflag [#allocation3], 1
    %10 = vsyncpa %s9, 0
    %11 = vsyncpa [#allocation4], 0
    %s12 = scalar_lea.sflag [#allocation4], 1
    %13 = vsyncpa %s12, 0
    loop: start=0, step=1, limit=4
    $region2: #{tpu_custom_call.1} parent=1 // loop_pre_header
      _
    $region3: #{tpu_custom_call.1} parent=1 // loop_header
      %s15 = sphi 0, %s19
      %p16 = scmp.ge.s32.totalorder %s15, 4
      %s22 = sphi 0, %s34
      %s23 = sphi 0, %s30
      %s24 = sphi 0, %s22
      %s25 = sphi 0, %s23
      %s26 = sphi 0, %s24
      %s27 = sphi 0, %s25
      %s35 = sphi 0, %s35
      %s37 = sphi 0, %s35
      %s38 = sphi 0, %s37
      %s52 = sphi 0, %s38
      %s60 = sphi 0, %s62
      %s63 = sphi 0, %s60
      %s64 = sphi 0, %s63
      %s80 = sphi 0, %s64
      %s88 = sphi 0, %s90
      %s91 = sphi 0, %s88
      %s92 = sphi 0, %s91
      %s108 = sphi 0, %s92
      %s116 = sphi 0, %s118
      %s119 = sphi 0, %s116
      %s120 = sphi 0, %s119
      %s136 = sphi 0, %s120
    $region4: #{tpu_custom_call.1} parent=1 // loop_header_branch
      %18 = sbr.rel (%p16) target = $region8
    $region5: #{tpu_custom_call.1} parent=1 // loop_body
      %s20 = ssub.s32 %s15, 1
      %s21 = ssub.s32 %s15, 2
      %s28 = sadd.s32 1, %s23
      %p29 = scmp.ge.s32.totalorder %s28, 1
      %s30 = scalar_select %p29, 0, %s28
      %s31 = sadd.s32 1, %s22
      %s32 = scalar_select %p29, %s31, %s22
      %p33 = scmp.ge.s32.totalorder %s32, 2
      %s34 = scalar_select %p33, 0, %s32
      %s36 = sadd.s32 %s35, 1
      %p39 = scmp.eq.s32.totalorder %s15, 1
      %p40 = scmp.ne.s32.totalorder %s35, %s37
      %p41 = scmp.eq.s32.totalorder %s15, 0
      %p42 = por %p40, %p41
      %p43 = scmp.ne.s32.totalorder %s35, %s37
      %p44 = scmp.eq.s32.totalorder %s20, 1
      %p45 = por %p43, %p44
      %p46 = scmp.ne.s32.totalorder %s37, %s38
      %p47 = scmp.eq.s32.totalorder %s20, 0
      %p48 = por %p46, %p47
      %p49 = scmp.ne.s32.totalorder %s37, %s38
      %p50 = scmp.eq.s32.totalorder %s21, 1
      %p51 = por %p49, %p50
      %p53 = scmp.ne.s32.totalorder %s38, %s52
      %p54 = scmp.eq.s32.totalorder %s21, 0
      %p55 = por %p53, %p54
      %s56 = ssub.s32 %s22, %s34
      %s57 = ssub.s32 %s23, %s30
      %s58 = sor.u32 %s56, %s57
      %p59 = scmp.eq.s32.totalorder %s58, 0
      %s61 = sadd.s32 %s60, 1
      %s62 = scalar_select %p59, %s60, %s61
      %p65 = pneg %p59
      %p66 = scmp.eq.s32.totalorder %s15, 1
      %p67 = por %p65, %p66
      %p68 = scmp.ne.s32.totalorder %s60, %s63
      %p69 = scmp.eq.s32.totalorder %s15, 0
      %p70 = por %p68, %p69
      %p71 = scmp.ne.s32.totalorder %s60, %s63
      %p72 = scmp.eq.s32.totalorder %s20, 1
      %p73 = por %p71, %p72
      %p74 = scmp.ne.s32.totalorder %s63, %s64
      %p75 = scmp.eq.s32.totalorder %s20, 0
      %p76 = por %p74, %p75
      %p77 = scmp.ne.s32.totalorder %s63, %s64
      %p78 = scmp.eq.s32.totalorder %s21, 1
      %p79 = por %p77, %p78
      %p81 = scmp.ne.s32.totalorder %s64, %s80
      %p82 = scmp.eq.s32.totalorder %s21, 0
      %p83 = por %p81, %p82
      %s84 = ssub.s32 %s22, %s34
      %s85 = ssub.s32 %s23, %s30
      %s86 = sor.u32 %s84, %s85
      %p87 = scmp.eq.s32.totalorder %s86, 0
      %s89 = sadd.s32 %s88, 1
      %s90 = scalar_select %p87, %s88, %s89
      %p93 = pneg %p87
      %p94 = scmp.eq.s32.totalorder %s15, 1
      %p95 = por %p93, %p94
      %p96 = scmp.ne.s32.totalorder %s88, %s91
      %p97 = scmp.eq.s32.totalorder %s15, 0
      %p98 = por %p96, %p97
      %p99 = scmp.ne.s32.totalorder %s88, %s91
      %p100 = scmp.eq.s32.totalorder %s20, 1
      %p101 = por %p99, %p100
      %p102 = scmp.ne.s32.totalorder %s91, %s92
      %p103 = scmp.eq.s32.totalorder %s20, 0
      %p104 = por %p102, %p103
      %p105 = scmp.ne.s32.totalorder %s91, %s92
      %p106 = scmp.eq.s32.totalorder %s21, 1
      %p107 = por %p105, %p106
      %p109 = scmp.ne.s32.totalorder %s92, %s108
      %p110 = scmp.eq.s32.totalorder %s21, 0
      %p111 = por %p109, %p110
      %s112 = ssub.s32 %s22, %s34
      %s113 = ssub.s32 %s23, %s30
      %s114 = sor.u32 %s112, %s113
      %p115 = scmp.eq.s32.totalorder %s114, 0
      %s117 = sadd.s32 %s116, 1
      %s118 = scalar_select %p115, %s116, %s117
      %p121 = pneg %p115
      %p122 = scmp.eq.s32.totalorder %s15, 1
      %p123 = por %p121, %p122
      %p124 = scmp.ne.s32.totalorder %s116, %s119
      %p125 = scmp.eq.s32.totalorder %s15, 0
      %p126 = por %p124, %p125
      %p127 = scmp.ne.s32.totalorder %s116, %s119
      %p128 = scmp.eq.s32.totalorder %s20, 1
      %p129 = por %p127, %p128
      %p130 = scmp.ne.s32.totalorder %s119, %s120
      %p131 = scmp.eq.s32.totalorder %s20, 0
      %p132 = por %p130, %p131
      %p133 = scmp.ne.s32.totalorder %s119, %s120
      %p134 = scmp.eq.s32.totalorder %s21, 1
      %p135 = por %p133, %p134
      %p137 = scmp.ne.s32.totalorder %s120, %s136
      %p138 = scmp.eq.s32.totalorder %s21, 0
      %p139 = por %p137, %p138
      %p140 = scmp.le.s32.totalorder 1, %s15
      %p141 = scmp.lt.s32.totalorder %s15, 3
      %p142 = pnand %p140, %p141
      %p143 = pneg %p142
      // Predicated region
      $region9: #{tpu_custom_call.1} parent=5 // pred_check
        _
      $region10: #{tpu_custom_call.1} parent=5 // pred_check_branch
        %145 = sbr.rel (%p142) target = $region12
      $region11: #{tpu_custom_call.1} parent=5 // pred_region
        %s146 = ssub.s32 %s15, 1
        // Predicated region
        $region13: #{tpu_custom_call.1} parent=11 // pred_check
          %p147 = pneg %p48
        $region14: #{tpu_custom_call.1} parent=11 // pred_check_branch
          %149 = sbr.rel (%p147) target = $region16
        $region15: #{tpu_custom_call.1} parent=11 // pred_region
          _
        $region16: #{tpu_custom_call.1} parent=11 // pred_fallthru
          _
      $region12: #{tpu_custom_call.1} parent=5 // pred_fallthru
        _
      %p150 = scmp.lt.s32.totalorder %s15, 2
      // Predicated region
      $region17: #{tpu_custom_call.1} parent=5 // pred_check
        %p151 = pneg %p150
      $region18: #{tpu_custom_call.1} parent=5 // pred_check_branch
        %153 = sbr.rel (%p151) target = $region20
      $region19: #{tpu_custom_call.1} parent=5 // pred_region
        // Predicated region
        $region21: #{tpu_custom_call.1} parent=19 // pred_check
          %p154 = pneg %p70
        $region22: #{tpu_custom_call.1} parent=19 // pred_check_branch
          %156 = sbr.rel (%p154) target = $region24
        $region23: #{tpu_custom_call.1} parent=19 // pred_region
          %s157 = sand.u32 %s60, 1
          %s158 = scalar_lea.sflag [#allocation3], %s157
          %s159 = sand.u32 %s60, 1
          %s160 = smul.addr %s159, 8
          %s161 = scalar_lea.vmem [#allocation2], %s160
          %s162 = smul.u32 2, %s23
          %s164 = ssub.s32 128, 128
          %165 = vsyncadd %s158, %s164
          %s166 = smul.addr %s22, 2
          %s167 = sadd.s32 %s162, %s166
          %s168 = smul.addr %s167, 64
          %s169 = scalar_lea.hbm %s1, %s168
          %s171 = sshll.u32 %s161, 4
          %s172 = int_to_ptr.vmem [resolvable:$true] %s171
          %174 = dma.hbm_to_vmem [thread:$0]  %s169, 128, %s172, %s158
        $region24: #{tpu_custom_call.1} parent=19 // pred_fallthru
          _
        // Predicated region
        $region25: #{tpu_custom_call.1} parent=19 // pred_check
          %p175 = pneg %p98
        $region26: #{tpu_custom_call.1} parent=19 // pred_check_branch
          %177 = sbr.rel (%p175) target = $region28
        $region27: #{tpu_custom_call.1} parent=19 // pred_region
          %s178 = smul.u32 2, %s23
          %p179 = scmp.lt.s32.totalorder %s22, 1
          %s180 = scalar_select %p179, %s22, 1
          %p181 = scmp.lt.s32.totalorder %s178, 1
          %s182 = scalar_select %p181, %s178, 1
          %s183 = smul.addr %s180, 2
          %s184 = sadd.s32 %s182, %s183
          %s185 = scalar_lea.vmem %s2, %s184
          %s186 = smul.u32 2, %s23
        $region28: #{tpu_custom_call.1} parent=19 // pred_fallthru
          _
      $region20: #{tpu_custom_call.1} parent=5 // pred_fallthru
        _
      %p187 = scmp.le.s32.totalorder 1, %s15
      %p188 = scmp.lt.s32.totalorder %s15, 3
      %p189 = pnand %p187, %p188
      %p190 = pneg %p189
      // Predicated region
      $region29: #{tpu_custom_call.1} parent=5 // pred_check
        _
      $region30: #{tpu_custom_call.1} parent=5 // pred_check_branch
        %192 = sbr.rel (%p189) target = $region32
      $region31: #{tpu_custom_call.1} parent=5 // pred_region
        %s193 = ssub.s32 %s15, 1
        %s194 = sand.u32 %s63, 1
        %s195 = scalar_lea.sflag [#allocation3], %s194
        %s196 = sand.u32 %s63, 1
        %s197 = smul.addr %s196, 8
        %s198 = scalar_lea.vmem [#allocation2], %s197
        // Predicated region
        $region33: #{tpu_custom_call.1} parent=31 // pred_check
          %p199 = pneg %p76
        $region34: #{tpu_custom_call.1} parent=31 // pred_check_branch
          %201 = sbr.rel (%p199) target = $region36
        $region35: #{tpu_custom_call.1} parent=31 // pred_region
          %202 = dma.done %s195, 128
        $region36: #{tpu_custom_call.1} parent=31 // pred_fallthru
          _
        %p203 = pneg %p48
        %p204 = pneg %p45
        %s205 = sand.u32 %s63, 1
        %s206 = scalar_lea.sflag [#allocation3], %s205
        %s207 = sand.u32 %s63, 1
        %s208 = smul.addr %s207, 8
        %s209 = scalar_lea.vmem [#allocation2], %s208
        %p210 = pneg %p76
        %p211 = pneg %p73
        %s212 = smul.u32 2, %s25
        %p213 = scmp.lt.s32.totalorder %s24, 1
        %s214 = scalar_select %p213, %s24, 1
        %p215 = scmp.lt.s32.totalorder %s212, 1
        %s216 = scalar_select %p215, %s212, 1
        %s217 = smul.addr %s214, 2
        %s218 = sadd.s32 %s216, %s217
        %s219 = scalar_lea.vmem %s2, %s218
        %p220 = pneg %p104
        %p221 = pneg %p101
        %p222 = pneg %p132
        %p223 = pneg %p129
        %s224 = sand.u32 %s119, 1
        %s225 = scalar_lea.sflag [#allocation4], %s224
        %s226 = sand.u32 %s119, 1
        %s227 = smul.addr %s226, 2
        %s228 = scalar_lea.vmem [#allocation5], %s227
        %s229 = smul.u32 2, %s25
        %s230 = smul.u32 2, %s25
        %p231 = scmp.lt.s32.totalorder %s24, 1
        %s232 = scalar_select %p231, %s24, 1
        %p233 = scmp.lt.s32.totalorder %s230, 1
        %s234 = scalar_select %p233, %s230, 1
        %s235 = smul.addr %s232, 2
        %s236 = sadd.s32 %s234, %s235
        %s237 = scalar_lea.vmem %s2, %s236
        %s238 = smul.u32 2, %s25
        %s239 = smul.u32 2, %s25
        %v240 = vld [vmem:[%s198] sm:$0xff]
        %v241 = vld [vmem:[%s237] sm:$0x3]
        %v242 = vld [vmem:[%s0] sm:$0xf]
        %v243 = vlaneseq
        %v244 = vshrl.u32 %v243, 7
        %vm245 = vcmp.eq.s32.totalorder %v241, 255
        %v246 = vsel %vm245, 0, %v241
        %v247 = vlaneseq
        %v248 = vshrl.u32 %v247, 7
        %v249 = vsub.s32 0, %v248
        %v250 = vrot.slane %v246, %v249
        %v251 = vlaneseq
        %v252 = vshrl.u32 %v251, 7
        %v253 = vsub.s32 1, %v252
        %v254 = vrot.slane %v246, %v253
        %vm255 = vcmp.eq.s32.totalorder %v244, %v250
        %vm256 = vcmp.eq.s32.totalorder %v244, %v254
        %v257 = vsel %vm255, 1, 0
        %v258 = vsel %vm256, 1, 0
        %v259 = vcvt.s32.f32 %v257
        %v260 = vcvt.s32.f32 %v258
        %v262 = vcombine.high %v240, %v240
        %vm264 = vcmask 1043456
        %v265 = vsel %vm264, %v240, -inf
        %v266 = vrot.slane %v265, 4
        %v267 = vmax.f32 %v265, %v266
        %v268 = vrot.slane %v267, 2
        %v269 = vmax.f32 %v267, %v268
        %v270 = vrot.slane %v269, 1
        %v271 = vmax.f32 %v269, %v270
        %v272 = vsel %vm264, %v262, -inf
        %v273 = vrot.slane %v272, 4
        %v274 = vmax.f32 %v272, %v273
        %v275 = vrot.slane %v274, 2
        %v276 = vmax.f32 %v274, %v275
        %v277 = vrot.slane %v276, 1
        %v278 = vmax.f32 %v276, %v277
        %v281 = vcombine.low %v271, %v278
        %v283 = vsub.f32 %v240, %v281
        %v284 = vmul.f32 %v283, 1.442695
        %v285 = vpow.pop %v284
        %v287 = vcombine.high %v285, %v285
        %v289 = vsel %vm264, %v285, 0.0
        %v290 = vrot.slane %v289, 4
        %v291 = vadd.f32 %v289, %v290
        %v292 = vrot.slane %v291, 2
        %v293 = vadd.f32 %v291, %v292
        %v294 = vrot.slane %v293, 1
        %v295 = vadd.f32 %v293, %v294
        %v296 = vsel %vm264, %v287, 0.0
        %v297 = vrot.slane %v296, 4
        %v298 = vadd.f32 %v296, %v297
        %v299 = vrot.slane %v298, 2
        %v300 = vadd.f32 %v298, %v299
        %v301 = vrot.slane %v300, 1
        %v302 = vadd.f32 %v300, %v301
        %v303 = vlog2.pop %v295
        %v304 = vmul.f32 %v303, 0.6931472
        %v305 = vlog2.pop %v302
        %v306 = vmul.f32 %v305, 0.6931472
        %v309 = vcombine.low %v259, %v260
        %v311 = vmul.f32 %v283, %v309
        %v313 = vcombine.high %v311, %v311
        %v315 = vsel %vm264, %v311, 0.0
        %v316 = vrot.slane %v315, 4
        %v317 = vadd.f32 %v315, %v316
        %v318 = vrot.slane %v317, 2
        %v319 = vadd.f32 %v317, %v318
        %v320 = vrot.slane %v319, 1
        %v321 = vadd.f32 %v319, %v320
        %v322 = vsel %vm264, %v313, 0.0
        %v323 = vrot.slane %v322, 4
        %v324 = vadd.f32 %v322, %v323
        %v325 = vrot.slane %v324, 2
        %v326 = vadd.f32 %v324, %v325
        %v327 = vrot.slane %v326, 1
        %v328 = vadd.f32 %v326, %v327
        %v329 = vsub.f32 %v321, %v304
        %v330 = vsub.f32 %v328, %v306
        %v331 = vmul.f32 %v329, 1.442695
        %v332 = vpow.pop %v331
        %v333 = vmul.f32 %v330, 1.442695
        %v334 = vpow.pop %v333
        %v335 = vsub.f32 0.0, %v329
        %v336 = vsub.f32 0.0, %v330
        %338 = vset.pattern.permute.xlu0 0
        %339 = vperm.xlu0 %338, %v242
        %v340 = vpop.permute.xlu0 %339
        %v342 = vmul.f32 %v340, %v259
        %v343 = vmul.f32 %v340, %v260
        %v344 = vsel %vm264, %v342, 0.0
        %v345 = vrot.slane %v344, 4
        %v346 = vadd.f32 %v344, %v345
        %v347 = vrot.slane %v346, 2
        %v348 = vadd.f32 %v346, %v347
        %v349 = vrot.slane %v348, 1
        %v350 = vadd.f32 %v348, %v349
        %v351 = vsel %vm264, %v343, 0.0
        %v352 = vrot.slane %v351, 4
        %v353 = vadd.f32 %v351, %v352
        %v354 = vrot.slane %v353, 2
        %v355 = vadd.f32 %v353, %v354
        %v356 = vrot.slane %v355, 1
        %v357 = vadd.f32 %v355, %v356
        %v358 = vsub.f32 1.0, %v332
        %v359 = vsub.f32 1.0, %v334
        %v360 = vmul.f32 %v335, %v358
        %v361 = vmul.f32 %v336, %v359
        %v362 = vmul.f32 %v360, %v350
        %v363 = vmul.f32 %v361, %v357
        %v366 = vcombine.low %v362, %v363
        %v368 = vunpack.c.l.s4 1966171168
        %v369 = vunpack.c.0.s8 %v368
        %v370 = vlaneseq
        %v371 = vshrl.u32 %v370, 7
        %v372 = vsub.s32 %v369, %v371
        %v373 = vrot.slane %v366, %v372
        %v375 = vunpack.c.l.s4 1966171168
        %v376 = vunpack.c.0.s8 %v375
        %v377 = vlaneseq
        %v378 = vshrl.u32 %v377, 7
        %v379 = vsub.s32 %v376, %v378
        %v380 = vrot.slane %v373, %v379
        %v382 = vsel %vm245, 0.0, %v380
        %v383 = vlaneseq
        %vm384 = vcmp.ge.s32.totalorder %v383, 0
        %vm385 = vcmp.lt.s32.totalorder %v383, 256
        %vm386 = vmand %vm384, %vm385
        %387 = vst.msk [vmem:[%s228] sm:$0x3] %vm386, %v382
        %s388 = sand.u32 %s119, 1
        %s389 = scalar_lea.sflag [#allocation4], %s388
        %s390 = sand.u32 %s119, 1
        %s391 = smul.addr %s390, 2
        %s392 = scalar_lea.vmem [#allocation5], %s391
        // Predicated region
        $region37: #{tpu_custom_call.1} parent=31 // pred_check
          %p393 = pneg %p129
        $region38: #{tpu_custom_call.1} parent=31 // pred_check_branch
          %395 = sbr.rel (%p393) target = $region40
        $region39: #{tpu_custom_call.1} parent=31 // pred_region
          %s396 = smul.u32 2, %s25
          %s398 = ssub.s32 32, 32
          %399 = vsyncadd %s389, %s398
          %s400 = smul.addr %s24, 2
          %s401 = sadd.s32 %s396, %s400
          %s402 = smul.addr %s401, 16
          %s403 = scalar_lea.hbm %s3, %s402
          %s405 = sshll.u32 %s392, 4
          %s406 = int_to_ptr.vmem [resolvable:$true] %s405
          %408 = dma.vmem_to_hbm [thread:$0]  %s406, 32, %s403, %s389
        $region40: #{tpu_custom_call.1} parent=31 // pred_fallthru
          _
      $region32: #{tpu_custom_call.1} parent=5 // pred_fallthru
        _
      %p409 = scmp.le.s32.totalorder 2, %s15
      // Predicated region
      $region41: #{tpu_custom_call.1} parent=5 // pred_check
        %p410 = pneg %p409
      $region42: #{tpu_custom_call.1} parent=5 // pred_check_branch
        %412 = sbr.rel (%p410) target = $region44
      $region43: #{tpu_custom_call.1} parent=5 // pred_region
        %s413 = ssub.s32 %s15, 2
        // Predicated region
        $region45: #{tpu_custom_call.1} parent=43 // pred_check
          %p414 = pneg %p135
        $region46: #{tpu_custom_call.1} parent=43 // pred_check_branch
          %416 = sbr.rel (%p414) target = $region48
        $region47: #{tpu_custom_call.1} parent=43 // pred_region
          %s417 = sand.u32 %s120, 1
          %s418 = scalar_lea.sflag [#allocation4], %s417
          %s419 = sand.u32 %s120, 1
          %s420 = smul.addr %s419, 2
          %s421 = scalar_lea.vmem [#allocation5], %s420
          %422 = dma.done %s418, 32
        $region48: #{tpu_custom_call.1} parent=43 // pred_fallthru
          _
      $region44: #{tpu_custom_call.1} parent=5 // pred_fallthru
        _
    $region6: #{tpu_custom_call.1} parent=1 // loop_footer
      %s19 = sadd.s32 1, %s15
    $region7: #{tpu_custom_call.1} parent=1 // loop_footer_branch
      %14 = sbr.rel target = $region3
    $region8: #{tpu_custom_call.1} parent=1 // loop_exit
      _
    %423 = vsyncpa [#allocation3], 1
    %s424 = scalar_lea.sflag [#allocation3], 1
    %425 = vsyncpa %s424, 1
    %426 = vsyncpa [#allocation4], 1
    %s427 = scalar_lea.sflag [#allocation4], 1
    %428 = vsyncpa %s427, 1

</llo_original>
